<compile_context>
chip_gen: v5e
topology: v5e:2x2
jax: 0.10.0
libtpu: 0.0.40
codegen_flags: <defaults>
</compile_context>

<pallas_src>
import functools

import jax
import jax.numpy as jnp
import numpy as np
from jax import lax
from jax.experimental import pallas as pl
from jax.experimental.pallas import tpu as pltpu


_DOUBLING_THRESHOLD = 16          # use log-step operator doubling when n_iter >= this
_TARGET_BLOCK_ELEMS = 256 * 1024  # ~1 MiB of f32 per operand block


# ----------------------------- Pallas kernel --------------------------------

def _make_spn_kernel(n_iter: int, horizontal: bool, reverse: bool):
    """Fused gate-normalisation + propagation over one (TH, TW) tile."""
    axis = 1 if horizontal else 0   # propagation axis: W -> lanes, H -> sublanes

    def kernel(x_ref, g1_ref, g2_ref, g3_ref, o_ref):
        x = x_ref[...]
        g1 = g1_ref[...]
        g2 = g2_ref[...]
        g3 = g3_ref[...]

        # ---- gate normalisation (spn_block) ----
        sum_abs = jnp.abs(g1) + jnp.abs(g2) + jnp.abs(g3)
        denom = jnp.where(sum_abs == 0.0, jnp.float32(1e-6), sum_abs)
        inv = pl.reciprocal(denom, approx=False)     # EUP slot, not VALU division
        need = denom >= 1.0
        g1n = jnp.where(need, g1 * inv, g1)
        g2n = jnp.where(need, g2 * inv, g2)
        # G3 only contributes to the denominator; its normalised value is unused.

        base = g1n * x                               # G1 * X, reused every step
        shape = base.shape
        p = shape[axis]

        # boundary iota — hoisted, reused by every shift below
        pos = lax.broadcasted_iota(jnp.int32, shape, axis)
        edge_idx = (p - 1) if reverse else 0
        is_edge = pos == edge_idx

        def shift1(v):
            """prop[i] = v[clamp(i -/+ 1)] — replicate border, distance 1."""
            s = ((p - 1) if reverse else 1) % p
            rolled = v if s == 0 else pltpu.roll(v, shift=s, axis=axis)
            return jnp.where(is_edge, v, rolled)

        def shiftk(v, k):
            """prop[i] = v[clamp(i -/+ k)] — replicate border, distance k."""
            if k <= 0:
                return v
            s = ((-k) % p) if reverse else (k % p)
            rolled = v if s == 0 else pltpu.roll(v, shift=s, axis=axis)
            if reverse:
                edge = v[p - 1:p, :] if axis == 0 else v[:, p - 1:p]
                mask = pos >= p - k
            else:
                edge = v[0:1, :] if axis == 0 else v[:, 0:1]
                mask = pos < k
            return jnp.where(mask, jnp.broadcast_to(edge, shape), rolled)

        if n_iter < _DOUBLING_THRESHOLD:
            # small images: plain unrolled recurrence (roll + fma per step)
            out = base
            for _ in range(n_iter):
                out = base + g2n * shift1(out)
        else:
            # Operator doubling of the affine recurrence
            #   T(v) = base + g2n * shift1(v);      want out = T^n_iter(base).
            #   T^k(v) = c_k + a_k * shiftk(v, k);  composition
            #   T^{m+k}: c = c_m + a_m*shiftk(c_k, m),  a = a_m*shiftk(a_k, m).
            # Square-and-multiply: ~2*log2(n_iter) passes instead of n_iter.
            c, a, k = base, g2n, 1          # running power T^(2^i)
            rc = ra = None                  # accumulated result map (identity)
            rk = 0
            nbits = n_iter
            while True:
                if nbits & 1:
                    if rc is None:
                        rc, ra, rk = c, a, k
                    else:
                        rc = c + a * shiftk(rc, k)
                        ra = a * shiftk(ra, k)
                        rk = rk + k
                nbits >>= 1
                if nbits == 0:
                    break
                c, a, k = c + a * shiftk(c, k), a * shiftk(a, k), 2 * k
            out = rc + ra * shiftk(base, rk)

        o_ref[...] = out.astype(o_ref.dtype)

    return kernel


# ------------------------------- wrapper -------------------------------------

def _pick_tile(extent, unit, max_tile):
    """Largest multiple of `unit` that divides `extent` and is <= max_tile.
    Falls back to the full extent (full-dim blocks bypass the (8,128) rule)."""
    if extent <= max_tile:
        return extent
    t = (max_tile // unit) * unit
    while t >= unit:
        if extent % t == 0:
            return t
        t -= unit
    return extent


def _bilinear_resize_nchw(g, h, w):
    # Matches F.interpolate(mode='bilinear', align_corners=False) for the
    # same-size / upsampling cases.
    # TODO(synk): pure-JAX glue, not a Pallas kernel (only runs when the gate
    # spatial size differs from x's; not exercised by the built-in test).
    n, c, _, _ = g.shape
    return jax.image.resize(g, (n, c, h, w), method="linear", antialias=False)


def spn_block_forward(x, g1, g2, g3, *, horizontal: bool, reverse: bool):
    """spn_block(horizontal, reverse).forward(x, G1, G2, G3). NCHW float32."""
    n, c, h, w = x.shape
    if g1.shape[2:] != (h, w):
        g1 = _bilinear_resize_nchw(g1, h, w)
    if g2.shape[2:] != (h, w):
        g2 = _bilinear_resize_nchw(g2, h, w)
    if g3.shape[2:] != (h, w):
        g3 = _bilinear_resize_nchw(g3, h, w)

    n_iter = max(h, w) // 2

    # Tile the NON-propagation spatial axis (the recurrence is fully
    # independent along it); the propagation axis stays whole inside a block.
    if horizontal:                      # propagate along W (lane axis)
        tw = w
        th = _pick_tile(h, 8, max(8, _TARGET_BLOCK_ELEMS // max(w, 1)))
        grid = (n, c, h // th)
        index_map = lambda ni, ci, ti: (ni, ci, ti, 0)
    else:                               # propagate along H (sublane axis)
        th = h
        tw = _pick_tile(w, 128, max(128, _TARGET_BLOCK_ELEMS // max(h, 1)))
        grid = (n, c, w // tw)
        index_map = lambda ni, ci, ti: (ni, ci, 0, ti)

    spec = pl.BlockSpec((None, None, th, tw), index_map)

    # 5 operands x 2 pipeline buffers + live temporaries; only raise the scoped
    # VMEM limit when the (rare) full-extent fallback yields a huge block.
    block_bytes = th * tw * x.dtype.itemsize
    compiler_kwargs = dict(
        dimension_semantics=("parallel", "parallel", "parallel"))
    est_vmem = 24 * block_bytes
    if est_vmem > 32 * 1024 * 1024:
        compiler_kwargs["vmem_limit_bytes"] = int(min(est_vmem, 48 * 1024 * 1024))

    kernel = _make_spn_kernel(n_iter, horizontal, reverse)
    return pl.pallas_call(
        kernel,
        out_shape=jax.ShapeDtypeStruct(x.shape, x.dtype),
        grid=grid,
        in_specs=[spec, spec, spec, spec],
        out_specs=spec,
        compiler_params=pltpu.CompilerParams(**compiler_kwargs),
    )(x, g1, g2, g3)


# --------------------------- pure-JAX reference ------------------------------

def spn_block_ref(x, g1, g2, g3, *, horizontal: bool, reverse: bool):
    n, c, h, w = x.shape
    if g1.shape[2:] != (h, w):
        g1 = _bilinear_resize_nchw(g1, h, w)
    if g2.shape[2:] != (h, w):
        g2 = _bilinear_resize_nchw(g2, h, w)
    if g3.shape[2:] != (h, w):
        g3 = _bilinear_resize_nchw(g3, h, w)

    sum_abs = jnp.abs(g1) + jnp.abs(g2) + jnp.abs(g3)
    denom = jnp.where(sum_abs == 0.0, 1e-6, sum_abs)
    mask = (denom >= 1.0).astype(x.dtype)
    g1 = (1.0 - mask) * g1 + mask * (g1 / denom)
    g2 = (1.0 - mask) * g2 + mask * (g2 / denom)

    out = g1 * x
    for _ in range(max(h, w) // 2):
        padded = jnp.pad(out, ((0, 0), (0, 0), (1, 1), (1, 1)), mode="edge")
        if horizontal:
            prop = (padded[:, :, 1:1 + h, 2:2 + w] if reverse
                    else padded[:, :, 1:1 + h, 0:w])
        else:
            prop = (padded[:, :, 2:2 + h, 1:1 + w] if reverse
                    else padded[:, :, 0:h, 1:1 + w])
        out = g1 * x + g2 * prop
    return out


# --------------------------------- main --------------------------------------

if __name__ == "__main__":
    key = jax.random.PRNGKey(0)

    # (N, C, H, W): the small square shape exercises the unrolled path
    # (n_iter = 8); the taller shape exercises the operator-doubling path
    # (n_iter = 24), including clamped shifts longer than the propagation axis.
    shapes = [(2, 4, 16, 16), (1, 3, 48, 16)]

    last = None
    for (N, C, H, W) in shapes:
        key, kx, k1, k2, k3 = jax.random.split(key, 5)
        x = jax.random.normal(kx, (N, C, H, W), jnp.float32)
        # gates: mix of |G1|+|G2|+|G3| >= 1 (normalised) and < 1 (pass-through)
        g1 = jax.random.normal(k1, (N, C, H, W), jnp.float32) * 0.6
        g2 = jax.random.normal(k2, (N, C, H, W), jnp.float32) * 0.6
        g3 = jax.random.normal(k3, (N, C, H, W), jnp.float32) * 0.6

        for horizontal in (True, False):
            for reverse in (False, True):
                fwd = jax.jit(functools.partial(
                    spn_block_forward, horizontal=horizontal, reverse=reverse))
                ref = jax.jit(functools.partial(
                    spn_block_ref, horizontal=horizontal, reverse=reverse))

                got = fwd(x, g1, g2, g3)
                jax.block_until_ready(got)
                exp = ref(x, g1, g2, g3)
                jax.block_until_ready(exp)

                a, b = np.asarray(got), np.asarray(exp)
                assert a.shape == b.shape, ((N, C, H, W), horizontal, reverse)
                err = float(np.max(np.abs(a - b)))
                assert np.allclose(a, b, rtol=1e-4, atol=1e-4), (
                    "mismatch", (N, C, H, W), horizontal, reverse, err)
                last = got

    jax.block_until_ready(last)
    print("KERNEL_OK")
</pallas_src>

<mosaic_0001>
module attributes {stable_mosaic.version = 11 : i64} {
  func.func @kernel(%arg0: i32, %arg1: i32, %arg2: i32, %arg3: memref<1x1x16x16xf32, #tpu.memory_space<vmem>>, %arg4: memref<1x1x16x16xf32, #tpu.memory_space<vmem>>, %arg5: memref<1x1x16x16xf32, #tpu.memory_space<vmem>>, %arg6: memref<1x1x16x16xf32, #tpu.memory_space<vmem>>, %arg7: memref<1x1x16x16xf32, #tpu.memory_space<vmem>>) attributes {dimension_semantics = [#tpu.dimension_semantics<parallel>, #tpu.dimension_semantics<parallel>, #tpu.dimension_semantics<parallel>], iteration_bounds = array<i64: 2, 4, 1>, scalar_prefetch = 0 : i64, scratch_operands = 0 : i64, tpu.core_type = #tpu.core_type<tc>, window_params = [{transform_indices = @transform_0, window_bounds = array<i64: 1, 1, 16, 16>}, {transform_indices = @transform_1, window_bounds = array<i64: 1, 1, 16, 16>}, {transform_indices = @transform_2, window_bounds = array<i64: 1, 1, 16, 16>}, {transform_indices = @transform_3, window_bounds = array<i64: 1, 1, 16, 16>}, {transform_indices = @transform_4, window_bounds = array<i64: 1, 1, 16, 16>}]} {
    %c0 = arith.constant 0 : index
    %c0_0 = arith.constant 0 : index
    %c0_1 = arith.constant 0 : index
    %c0_2 = arith.constant 0 : index
    %0 = vector.load %arg3[%c0, %c0_0, %c0_1, %c0_2] : memref<1x1x16x16xf32, #tpu.memory_space<vmem>>, vector<1x1x16x16xf32>
    %1 = vector.shape_cast %0 : vector<1x1x16x16xf32> to vector<16x16xf32>
    %c0_3 = arith.constant 0 : index
    %c0_4 = arith.constant 0 : index
    %c0_5 = arith.constant 0 : index
    %c0_6 = arith.constant 0 : index
    %2 = vector.load %arg4[%c0_3, %c0_4, %c0_5, %c0_6] : memref<1x1x16x16xf32, #tpu.memory_space<vmem>>, vector<1x1x16x16xf32>
    %3 = vector.shape_cast %2 : vector<1x1x16x16xf32> to vector<16x16xf32>
    %c0_7 = arith.constant 0 : index
    %c0_8 = arith.constant 0 : index
    %c0_9 = arith.constant 0 : index
    %c0_10 = arith.constant 0 : index
    %4 = vector.load %arg5[%c0_7, %c0_8, %c0_9, %c0_10] : memref<1x1x16x16xf32, #tpu.memory_space<vmem>>, vector<1x1x16x16xf32>
    %5 = vector.shape_cast %4 : vector<1x1x16x16xf32> to vector<16x16xf32>
    %c0_11 = arith.constant 0 : index
    %c0_12 = arith.constant 0 : index
    %c0_13 = arith.constant 0 : index
    %c0_14 = arith.constant 0 : index
    %6 = vector.load %arg6[%c0_11, %c0_12, %c0_13, %c0_14] : memref<1x1x16x16xf32, #tpu.memory_space<vmem>>, vector<1x1x16x16xf32>
    %7 = vector.shape_cast %6 : vector<1x1x16x16xf32> to vector<16x16xf32>
    %8 = math.absf %3 : vector<16x16xf32>
    %9 = math.absf %5 : vector<16x16xf32>
    %10 = arith.addf %8, %9 : vector<16x16xf32>
    %11 = math.absf %7 : vector<16x16xf32>
    %12 = arith.addf %10, %11 : vector<16x16xf32>
    %cst = arith.constant 0.000000e+00 : f32
    %13 = vector.broadcast %cst : f32 to vector<16x16xf32>
    %14 = arith.cmpf oeq, %12, %13 : vector<16x16xf32>
    %cst_15 = arith.constant 9.99999997E-7 : f32
    %15 = vector.broadcast %cst_15 : f32 to vector<16x16xf32>
    %16 = arith.select %14, %15, %12 : vector<16x16xi1>, vector<16x16xf32>
    %17 = tpu.reciprocal %16 : vector<16x16xf32> -> vector<16x16xf32>
    %cst_16 = arith.constant 1.000000e+00 : f32
    %18 = vector.broadcast %cst_16 : f32 to vector<16x16xf32>
    %19 = arith.cmpf oge, %16, %18 : vector<16x16xf32>
    %20 = arith.mulf %3, %17 : vector<16x16xf32>
    %21 = arith.select %19, %20, %3 : vector<16x16xi1>, vector<16x16xf32>
    %22 = arith.mulf %5, %17 : vector<16x16xf32>
    %23 = arith.select %19, %22, %5 : vector<16x16xi1>, vector<16x16xf32>
    %24 = arith.mulf %21, %1 : vector<16x16xf32>
    %25 = tpu.iota {dimensions = array<i32: 1>} : vector<16x16xi32>
    %c0_i32 = arith.constant 0 : i32
    %26 = vector.broadcast %c0_i32 : i32 to vector<16x16xi32>
    %27 = arith.cmpi eq, %25, %26 : vector<16x16xi32>
    %c1_i32 = arith.constant 1 : i32
    %28 = tpu.dynamic_rotate %24 by %c1_i32 dim 1 : vector<16x16xf32>, i32 -> vector<16x16xf32>
    %29 = arith.select %27, %24, %28 : vector<16x16xi1>, vector<16x16xf32>
    %30 = arith.mulf %23, %29 : vector<16x16xf32>
    %31 = arith.addf %24, %30 : vector<16x16xf32>
    %c1_i32_17 = arith.constant 1 : i32
    %32 = tpu.dynamic_rotate %31 by %c1_i32_17 dim 1 : vector<16x16xf32>, i32 -> vector<16x16xf32>
    %33 = arith.select %27, %31, %32 : vector<16x16xi1>, vector<16x16xf32>
    %34 = arith.mulf %23, %33 : vector<16x16xf32>
    %35 = arith.addf %24, %34 : vector<16x16xf32>
    %c1_i32_18 = arith.constant 1 : i32
    %36 = tpu.dynamic_rotate %35 by %c1_i32_18 dim 1 : vector<16x16xf32>, i32 -> vector<16x16xf32>
    %37 = arith.select %27, %35, %36 : vector<16x16xi1>, vector<16x16xf32>
    %38 = arith.mulf %23, %37 : vector<16x16xf32>
    %39 = arith.addf %24, %38 : vector<16x16xf32>
    %c1_i32_19 = arith.constant 1 : i32
    %40 = tpu.dynamic_rotate %39 by %c1_i32_19 dim 1 : vector<16x16xf32>, i32 -> vector<16x16xf32>
    %41 = arith.select %27, %39, %40 : vector<16x16xi1>, vector<16x16xf32>
    %42 = arith.mulf %23, %41 : vector<16x16xf32>
    %43 = arith.addf %24, %42 : vector<16x16xf32>
    %c1_i32_20 = arith.constant 1 : i32
    %44 = tpu.dynamic_rotate %43 by %c1_i32_20 dim 1 : vector<16x16xf32>, i32 -> vector<16x16xf32>
    %45 = arith.select %27, %43, %44 : vector<16x16xi1>, vector<16x16xf32>
    %46 = arith.mulf %23, %45 : vector<16x16xf32>
    %47 = arith.addf %24, %46 : vector<16x16xf32>
    %c1_i32_21 = arith.constant 1 : i32
    %48 = tpu.dynamic_rotate %47 by %c1_i32_21 dim 1 : vector<16x16xf32>, i32 -> vector<16x16xf32>
    %49 = arith.select %27, %47, %48 : vector<16x16xi1>, vector<16x16xf32>
    %50 = arith.mulf %23, %49 : vector<16x16xf32>
    %51 = arith.addf %24, %50 : vector<16x16xf32>
    %c1_i32_22 = arith.constant 1 : i32
    %52 = tpu.dynamic_rotate %51 by %c1_i32_22 dim 1 : vector<16x16xf32>, i32 -> vector<16x16xf32>
    %53 = arith.select %27, %51, %52 : vector<16x16xi1>, vector<16x16xf32>
    %54 = arith.mulf %23, %53 : vector<16x16xf32>
    %55 = arith.addf %24, %54 : vector<16x16xf32>
    %c1_i32_23 = arith.constant 1 : i32
    %56 = tpu.dynamic_rotate %55 by %c1_i32_23 dim 1 : vector<16x16xf32>, i32 -> vector<16x16xf32>
    %57 = arith.select %27, %55, %56 : vector<16x16xi1>, vector<16x16xf32>
    %58 = arith.mulf %23, %57 : vector<16x16xf32>
    %59 = arith.addf %24, %58 : vector<16x16xf32>
    %c0_24 = arith.constant 0 : index
    %c0_25 = arith.constant 0 : index
    %c0_26 = arith.constant 0 : index
    %c0_27 = arith.constant 0 : index
    %60 = vector.load %arg7[%c0_24, %c0_25, %c0_26, %c0_27] : memref<1x1x16x16xf32, #tpu.memory_space<vmem>>, vector<1x1x16x16xf32>
    %61 = vector.shape_cast %60 : vector<1x1x16x16xf32> to vector<16x16xf32>
    %62 = vector.shape_cast %59 : vector<16x16xf32> to vector<1x1x16x16xf32>
    tpu.vector_store %arg7[%c0_24, %c0_25, %c0_26, %c0_27], %62 {strides = array<i32>} : memref<1x1x16x16xf32, #tpu.memory_space<vmem>>, vector<1x1x16x16xf32>,
    return
  }
  func.func @transform_0(%arg0: i32, %arg1: i32, %arg2: i32) -> (i32, i32, i32, i32) {
    %c0_i32 = arith.constant 0 : i32
    %c0_i32_0 = arith.constant 0 : i32
    return %arg0, %arg1, %arg2, %c0_i32 : i32, i32, i32, i32
  }
  func.func @transform_1(%arg0: i32, %arg1: i32, %arg2: i32) -> (i32, i32, i32, i32) {
    %c0_i32 = arith.constant 0 : i32
    %c0_i32_0 = arith.constant 0 : i32
    return %arg0, %arg1, %arg2, %c0_i32 : i32, i32, i32, i32
  }
  func.func @transform_2(%arg0: i32, %arg1: i32, %arg2: i32) -> (i32, i32, i32, i32) {
    %c0_i32 = arith.constant 0 : i32
    %c0_i32_0 = arith.constant 0 : i32
    return %arg0, %arg1, %arg2, %c0_i32 : i32, i32, i32, i32
  }
  func.func @transform_3(%arg0: i32, %arg1: i32, %arg2: i32) -> (i32, i32, i32, i32) {
    %c0_i32 = arith.constant 0 : i32
    %c0_i32_0 = arith.constant 0 : i32
    return %arg0, %arg1, %arg2, %c0_i32 : i32, i32, i32, i32
  }
  func.func @transform_4(%arg0: i32, %arg1: i32, %arg2: i32) -> (i32, i32, i32, i32) {
    %c0_i32 = arith.constant 0 : i32
    %c0_i32_0 = arith.constant 0 : i32
    return %arg0, %arg1, %arg2, %c0_i32 : i32, i32, i32, i32
  }
}

</mosaic_0001>

<llo_original>
// kernel: spn_block_forward.1
$region0: #{spn_block_forward.1}
  #allocation0 [shape = 'u32[]', space=smem, size = 0x4, offset = 0x4, fixed_abs, tag = 'smem constant byte address 0x4 - core index']
  #allocation1 [shape = 'u32[72,128]{1,0:T(1,128)}', space=vmem, size = 0x9000, scoped, tag = 'internal scratch']
  %s0 = inlined_call_operand.hbm [shape: f32[2,4,16,16], index: 0, kind: input, shape index: {}]
  %s1 = inlined_call_operand.hbm [shape: f32[2,4,16,16], index: 1, kind: input, shape index: {}]
  %s2 = inlined_call_operand.hbm [shape: f32[2,4,16,16], index: 2, kind: input, shape index: {}]
  %s3 = inlined_call_operand.hbm [shape: f32[2,4,16,16], index: 3, kind: input, shape index: {}]
  %s4 = inlined_call_operand.hbm [shape: f32[2,4,16,16], index: 4, kind: output, shape index: {}]
  %s5 = sld [smem:[#allocation0]]
  $region65: #{spn_block_forward.1} parent=0
    _
  %s7 = ssub.s32 1, %s5
  %s8 = scalar_select 0, %s7, %s5
  $region1: #{spn_block_forward.1} parent=0
    #allocation2 [shape = 'u8[16384]{0}', space=vmem, size = 0x4000, scoped, tag = 'input window, operand 0']
    #allocation3 [shape = 's32[2]{0}', space=sflag, size = 0x8, scoped, tag = 'scoped memory for spn_block_forward.1']
    #allocation4 [shape = 's32[2]{0}', space=sflag, size = 0x8, scoped, tag = 'scoped memory for spn_block_forward.1']
    #allocation5 [shape = 'u8[16384]{0}', space=vmem, size = 0x4000, scoped, tag = 'input window, operand 1']
    #allocation6 [shape = 's32[2]{0}', space=sflag, size = 0x8, scoped, tag = 'scoped memory for spn_block_forward.1']
    #allocation7 [shape = 'u8[16384]{0}', space=vmem, size = 0x4000, scoped, tag = 'input window, operand 2']
    #allocation8 [shape = 'u8[16384]{0}', space=vmem, size = 0x4000, scoped, tag = 'input window, operand 3']
    #allocation9 [shape = 's32[2]{0}', space=sflag, size = 0x8, scoped, tag = 'scoped memory for spn_block_forward.1']
    #allocation10 [shape = 'u8[16384]{0}', space=vmem, size = 0x4000, scoped, tag = 'output window, operand 0']
    %9 = vsyncpa [#allocation3], 0
    %s10 = scalar_lea.sflag [#allocation3], 1
    %11 = vsyncpa %s10, 0
    %12 = vsyncpa [#allocation6], 0
    %s13 = scalar_lea.sflag [#allocation6], 1
    %14 = vsyncpa %s13, 0
    %15 = vsyncpa [#allocation9], 0
    %s16 = scalar_lea.sflag [#allocation9], 1
    %17 = vsyncpa %s16, 0
    %18 = vsyncpa [#allocation4], 0
    %s19 = scalar_lea.sflag [#allocation4], 1
    %20 = vsyncpa %s19, 0
    loop: start=0, step=1, limit=10
    $region2: #{spn_block_forward.1} parent=1 // loop_pre_header
      _
    $region3: #{spn_block_forward.1} parent=1 // loop_header
      %s22 = sphi 0, %s26
      %p23 = scmp.ge.s32.totalorder %s22, 10
      %s29 = sphi 0, %s48
      %s30 = sphi 0, %s44
      %s31 = sphi 0, %s40
      %s32 = sphi 0, %s29
      %s33 = sphi 0, %s30
      %s34 = sphi 0, %s31
      %s35 = sphi 0, %s32
      %s36 = sphi 0, %s33
      %s37 = sphi 0, %s34
      %s55 = sphi 0, %s57
      %s58 = sphi 0, %s55
      %s59 = sphi 0, %s58
      %s75 = sphi 0, %s59
      %s85 = sphi 0, %s87
      %s88 = sphi 0, %s85
      %s89 = sphi 0, %s88
      %s105 = sphi 0, %s89
      %s115 = sphi 0, %s117
      %s118 = sphi 0, %s115
      %s119 = sphi 0, %s118
      %s135 = sphi 0, %s119
      %s145 = sphi 0, %s147
      %s148 = sphi 0, %s145
      %s149 = sphi 0, %s148
      %s165 = sphi 0, %s149
      %s175 = sphi 0, %s177
      %s178 = sphi 0, %s175
      %s179 = sphi 0, %s178
      %s195 = sphi 0, %s179
    $region4: #{spn_block_forward.1} parent=1 // loop_header_branch
      %25 = sbr.rel (%p23) target = $region8
    $region5: #{spn_block_forward.1} parent=1 // loop_body
      %s27 = ssub.s32 %s22, 1
      %s28 = ssub.s32 %s22, 2
      %s38 = sadd.s32 1, %s31
      %p39 = scmp.ge.s32.totalorder %s38, 1
      %s40 = scalar_select %p39, 0, %s38
      %s41 = sadd.s32 1, %s30
      %s42 = scalar_select %p39, %s41, %s30
      %p43 = scmp.ge.s32.totalorder %s42, 4
      %s44 = scalar_select %p43, 0, %s42
      %s45 = sadd.s32 1, %s29
      %s46 = scalar_select %p43, %s45, %s29
      %p47 = scmp.ge.s32.totalorder %s46, 2
      %s48 = scalar_select %p47, 0, %s46
      %s49 = ssub.s32 %s29, %s48
      %s50 = ssub.s32 %s30, %s44
      %s51 = sor.u32 %s49, %s50
      %s52 = ssub.s32 %s31, %s40
      %s53 = sor.u32 %s51, %s52
      %p54 = scmp.eq.s32.totalorder %s53, 0
      %s56 = sadd.s32 %s55, 1
      %s57 = scalar_select %p54, %s55, %s56
      %p60 = pneg %p54
      %p61 = scmp.eq.s32.totalorder %s22, 7
      %p62 = por %p60, %p61
      %p63 = scmp.ne.s32.totalorder %s55, %s58
      %p64 = scmp.eq.s32.totalorder %s22, 0
      %p65 = por %p63, %p64
      %p66 = scmp.ne.s32.totalorder %s55, %s58
      %p67 = scmp.eq.s32.totalorder %s27, 7
      %p68 = por %p66, %p67
      %p69 = scmp.ne.s32.totalorder %s58, %s59
      %p70 = scmp.eq.s32.totalorder %s27, 0
      %p71 = por %p69, %p70
      %p72 = scmp.ne.s32.totalorder %s58, %s59
      %p73 = scmp.eq.s32.totalorder %s28, 7
      %p74 = por %p72, %p73
      %p76 = scmp.ne.s32.totalorder %s59, %s75
      %p77 = scmp.eq.s32.totalorder %s28, 0
      %p78 = por %p76, %p77
      %s79 = ssub.s32 %s29, %s48
      %s80 = ssub.s32 %s30, %s44
      %s81 = sor.u32 %s79, %s80
      %s82 = ssub.s32 %s31, %s40
      %s83 = sor.u32 %s81, %s82
      %p84 = scmp.eq.s32.totalorder %s83, 0
      %s86 = sadd.s32 %s85, 1
      %s87 = scalar_select %p84, %s85, %s86
      %p90 = pneg %p84
      %p91 = scmp.eq.s32.totalorder %s22, 7
      %p92 = por %p90, %p91
      %p93 = scmp.ne.s32.totalorder %s85, %s88
      %p94 = scmp.eq.s32.totalorder %s22, 0
      %p95 = por %p93, %p94
      %p96 = scmp.ne.s32.totalorder %s85, %s88
      %p97 = scmp.eq.s32.totalorder %s27, 7
      %p98 = por %p96, %p97
      %p99 = scmp.ne.s32.totalorder %s88, %s89
      %p100 = scmp.eq.s32.totalorder %s27, 0
      %p101 = por %p99, %p100
      %p102 = scmp.ne.s32.totalorder %s88, %s89
      %p103 = scmp.eq.s32.totalorder %s28, 7
      %p104 = por %p102, %p103
      %p106 = scmp.ne.s32.totalorder %s89, %s105
      %p107 = scmp.eq.s32.totalorder %s28, 0
      %p108 = por %p106, %p107
      %s109 = ssub.s32 %s29, %s48
      %s110 = ssub.s32 %s30, %s44
      %s111 = sor.u32 %s109, %s110
      %s112 = ssub.s32 %s31, %s40
      %s113 = sor.u32 %s111, %s112
      %p114 = scmp.eq.s32.totalorder %s113, 0
      %s116 = sadd.s32 %s115, 1
      %s117 = scalar_select %p114, %s115, %s116
      %p120 = pneg %p114
      %p121 = scmp.eq.s32.totalorder %s22, 7
      %p122 = por %p120, %p121
      %p123 = scmp.ne.s32.totalorder %s115, %s118
      %p124 = scmp.eq.s32.totalorder %s22, 0
      %p125 = por %p123, %p124
      %p126 = scmp.ne.s32.totalorder %s115, %s118
      %p127 = scmp.eq.s32.totalorder %s27, 7
      %p128 = por %p126, %p127
      %p129 = scmp.ne.s32.totalorder %s118, %s119
      %p130 = scmp.eq.s32.totalorder %s27, 0
      %p131 = por %p129, %p130
      %p132 = scmp.ne.s32.totalorder %s118, %s119
      %p133 = scmp.eq.s32.totalorder %s28, 7
      %p134 = por %p132, %p133
      %p136 = scmp.ne.s32.totalorder %s119, %s135
      %p137 = scmp.eq.s32.totalorder %s28, 0
      %p138 = por %p136, %p137
      %s139 = ssub.s32 %s29, %s48
      %s140 = ssub.s32 %s30, %s44
      %s141 = sor.u32 %s139, %s140
      %s142 = ssub.s32 %s31, %s40
      %s143 = sor.u32 %s141, %s142
      %p144 = scmp.eq.s32.totalorder %s143, 0
      %s146 = sadd.s32 %s145, 1
      %s147 = scalar_select %p144, %s145, %s146
      %p150 = pneg %p144
      %p151 = scmp.eq.s32.totalorder %s22, 7
      %p152 = por %p150, %p151
      %p153 = scmp.ne.s32.totalorder %s145, %s148
      %p154 = scmp.eq.s32.totalorder %s22, 0
      %p155 = por %p153, %p154
      %p156 = scmp.ne.s32.totalorder %s145, %s148
      %p157 = scmp.eq.s32.totalorder %s27, 7
      %p158 = por %p156, %p157
      %p159 = scmp.ne.s32.totalorder %s148, %s149
      %p160 = scmp.eq.s32.totalorder %s27, 0
      %p161 = por %p159, %p160
      %p162 = scmp.ne.s32.totalorder %s148, %s149
      %p163 = scmp.eq.s32.totalorder %s28, 7
      %p164 = por %p162, %p163
      %p166 = scmp.ne.s32.totalorder %s149, %s165
      %p167 = scmp.eq.s32.totalorder %s28, 0
      %p168 = por %p166, %p167
      %s169 = ssub.s32 %s29, %s48
      %s170 = ssub.s32 %s30, %s44
      %s171 = sor.u32 %s169, %s170
      %s172 = ssub.s32 %s31, %s40
      %s173 = sor.u32 %s171, %s172
      %p174 = scmp.eq.s32.totalorder %s173, 0
      %s176 = sadd.s32 %s175, 1
      %s177 = scalar_select %p174, %s175, %s176
      %p180 = pneg %p174
      %p181 = scmp.eq.s32.totalorder %s22, 7
      %p182 = por %p180, %p181
      %p183 = scmp.ne.s32.totalorder %s175, %s178
      %p184 = scmp.eq.s32.totalorder %s22, 0
      %p185 = por %p183, %p184
      %p186 = scmp.ne.s32.totalorder %s175, %s178
      %p187 = scmp.eq.s32.totalorder %s27, 7
      %p188 = por %p186, %p187
      %p189 = scmp.ne.s32.totalorder %s178, %s179
      %p190 = scmp.eq.s32.totalorder %s27, 0
      %p191 = por %p189, %p190
      %p192 = scmp.ne.s32.totalorder %s178, %s179
      %p193 = scmp.eq.s32.totalorder %s28, 7
      %p194 = por %p192, %p193
      %p196 = scmp.ne.s32.totalorder %s179, %s195
      %p197 = scmp.eq.s32.totalorder %s28, 0
      %p198 = por %p196, %p197
      %p199 = scmp.le.s32.totalorder 1, %s22
      %p200 = scmp.lt.s32.totalorder %s22, 9
      %p201 = pnand %p199, %p200
      %p202 = pneg %p201
      // Predicated region
      $region9: #{spn_block_forward.1} parent=5 // pred_check
        _
      $region10: #{spn_block_forward.1} parent=5 // pred_check_branch
        %204 = sbr.rel (%p201) target = $region12
      $region11: #{spn_block_forward.1} parent=5 // pred_region
        %s205 = ssub.s32 %s22, 1
      $region12: #{spn_block_forward.1} parent=5 // pred_fallthru
        _
      %p206 = scmp.lt.s32.totalorder %s22, 8
      // Predicated region
      $region13: #{spn_block_forward.1} parent=5 // pred_check
        %p207 = pneg %p206
      $region14: #{spn_block_forward.1} parent=5 // pred_check_branch
        %209 = sbr.rel (%p207) target = $region16
      $region15: #{spn_block_forward.1} parent=5 // pred_region
        // Predicated region
        $region17: #{spn_block_forward.1} parent=15 // pred_check
          %p210 = pneg %p65
        $region18: #{spn_block_forward.1} parent=15 // pred_check_branch
          %212 = sbr.rel (%p210) target = $region20
        $region19: #{spn_block_forward.1} parent=15 // pred_region
          %s213 = sand.u32 %s55, 1
          %s214 = scalar_lea.sflag [#allocation3], %s213
          %s215 = sand.u32 %s55, 1
          %s216 = smul.addr %s215, 16
          %s217 = scalar_lea.vmem [#allocation2], %s216
          %s218 = smul.u32 2, %s31
          %220 = vsyncadd %s214, 0
          %s221 = smul.addr %s30, 2
          %s222 = sadd.s32 %s218, %s221
          %s223 = smul.addr %s29, 8
          %s224 = sadd.s32 %s222, %s223
          %s225 = smul.addr %s224, 8
          %s226 = scalar_lea.hbm %s0, %s225
          %s227 = sshll.u32 %s226, 4
          %s228 = int_to_ptr.hbm [resolvable:$true] %s227
          %s229 = sshll.u32 %s217, 4
          %s230 = int_to_ptr.vmem [resolvable:$true] %s229
          %235 = dma.hbm_to_vmem [thread:$0]  %s228, 256, %s230, %s214, 128, 128, 8
        $region20: #{spn_block_forward.1} parent=15 // pred_fallthru
          _
        // Predicated region
        $region21: #{spn_block_forward.1} parent=15 // pred_check
          %p236 = pneg %p95
        $region22: #{spn_block_forward.1} parent=15 // pred_check_branch
          %238 = sbr.rel (%p236) target = $region24
        $region23: #{spn_block_forward.1} parent=15 // pred_region
          %s239 = sand.u32 %s22, 1
          %s240 = scalar_lea.sflag [#allocation6], %s239
          %s241 = sand.u32 %s85, 1
          %s242 = smul.addr %s241, 16
          %s243 = scalar_lea.vmem [#allocation5], %s242
          %s244 = smul.u32 2, %s31
          %246 = vsyncadd %s240, 0
          %s247 = smul.addr %s30, 2
          %s248 = sadd.s32 %s244, %s247
          %s249 = smul.addr %s29, 8
          %s250 = sadd.s32 %s248, %s249
          %s251 = smul.addr %s250, 8
          %s252 = scalar_lea.hbm %s1, %s251
          %s253 = sshll.u32 %s252, 4
          %s254 = int_to_ptr.hbm [resolvable:$true] %s253
          %s255 = sshll.u32 %s243, 4
          %s256 = int_to_ptr.vmem [resolvable:$true] %s255
          %261 = dma.hbm_to_vmem [thread:$0]  %s254, 256, %s256, %s240, 128, 128, 8
        $region24: #{spn_block_forward.1} parent=15 // pred_fallthru
          _
        // Predicated region
        $region25: #{spn_block_forward.1} parent=15 // pred_check
          %p262 = pneg %p125
        $region26: #{spn_block_forward.1} parent=15 // pred_check_branch
          %264 = sbr.rel (%p262) target = $region28
        $region27: #{spn_block_forward.1} parent=15 // pred_region
          %s265 = sand.u32 %s22, 1
          %s266 = scalar_lea.sflag [#allocation6], %s265
          %s267 = sand.u32 %s115, 1
          %s268 = smul.addr %s267, 16
          %s269 = scalar_lea.vmem [#allocation7], %s268
          %s270 = smul.u32 2, %s31
          %272 = vsyncadd %s266, 0
          %s273 = smul.addr %s30, 2
          %s274 = sadd.s32 %s270, %s273
          %s275 = smul.addr %s29, 8
          %s276 = sadd.s32 %s274, %s275
          %s277 = smul.addr %s276, 8
          %s278 = scalar_lea.hbm %s2, %s277
          %s279 = sshll.u32 %s278, 4
          %s280 = int_to_ptr.hbm [resolvable:$true] %s279
          %s281 = sshll.u32 %s269, 4
          %s282 = int_to_ptr.vmem [resolvable:$true] %s281
          %287 = dma.hbm_to_vmem [thread:$0]  %s280, 256, %s282, %s266, 128, 128, 8
        $region28: #{spn_block_forward.1} parent=15 // pred_fallthru
          _
        // Predicated region
        $region29: #{spn_block_forward.1} parent=15 // pred_check
          %p288 = pneg %p155
        $region30: #{spn_block_forward.1} parent=15 // pred_check_branch
          %290 = sbr.rel (%p288) target = $region32
        $region31: #{spn_block_forward.1} parent=15 // pred_region
          %s291 = sand.u32 %s145, 1
          %s292 = scalar_lea.sflag [#allocation9], %s291
          %s293 = sand.u32 %s145, 1
          %s294 = smul.addr %s293, 16
          %s295 = scalar_lea.vmem [#allocation8], %s294
          %s296 = smul.u32 2, %s31
          %298 = vsyncadd %s292, 0
          %s299 = smul.addr %s30, 2
          %s300 = sadd.s32 %s296, %s299
          %s301 = smul.addr %s29, 8
          %s302 = sadd.s32 %s300, %s301
          %s303 = smul.addr %s302, 8
          %s304 = scalar_lea.hbm %s3, %s303
          %s305 = sshll.u32 %s304, 4
          %s306 = int_to_ptr.hbm [resolvable:$true] %s305
          %s307 = sshll.u32 %s295, 4
          %s308 = int_to_ptr.vmem [resolvable:$true] %s307
          %313 = dma.hbm_to_vmem [thread:$0]  %s306, 256, %s308, %s292, 128, 128, 8
        $region32: #{spn_block_forward.1} parent=15 // pred_fallthru
          _
      $region16: #{spn_block_forward.1} parent=5 // pred_fallthru
        _
      %p314 = scmp.le.s32.totalorder 1, %s22
      %p315 = scmp.lt.s32.totalorder %s22, 9
      %p316 = pnand %p314, %p315
      %p317 = pneg %p316
      // Predicated region
      $region33: #{spn_block_forward.1} parent=5 // pred_check
        _
      $region34: #{spn_block_forward.1} parent=5 // pred_check_branch
        %319 = sbr.rel (%p316) target = $region36
      $region35: #{spn_block_forward.1} parent=5 // pred_region
        %s320 = ssub.s32 %s22, 1
        %s321 = sand.u32 %s58, 1
        %s322 = scalar_lea.sflag [#allocation3], %s321
        %s323 = sand.u32 %s58, 1
        %s324 = smul.addr %s323, 16
        %s325 = scalar_lea.vmem [#allocation2], %s324
        // Predicated region
        $region37: #{spn_block_forward.1} parent=35 // pred_check
          %p326 = pneg %p71
        $region38: #{spn_block_forward.1} parent=35 // pred_check_branch
          %328 = sbr.rel (%p326) target = $region40
        $region39: #{spn_block_forward.1} parent=35 // pred_region
          %330 = dma.done %s322, 256
        $region40: #{spn_block_forward.1} parent=35 // pred_fallthru
          _
        %s331 = sand.u32 %s27, 1
        %s332 = scalar_lea.sflag [#allocation6], %s331
        %s333 = sand.u32 %s88, 1
        %s334 = smul.addr %s333, 16
        %s335 = scalar_lea.vmem [#allocation5], %s334
        // Predicated region
        $region41: #{spn_block_forward.1} parent=35 // pred_check
          %p336 = pneg %p101
        $region42: #{spn_block_forward.1} parent=35 // pred_check_branch
          %338 = sbr.rel (%p336) target = $region44
        $region43: #{spn_block_forward.1} parent=35 // pred_region
          %340 = dma.done %s332, 256
        $region44: #{spn_block_forward.1} parent=35 // pred_fallthru
          _
        %s341 = sand.u32 %s27, 1
        %s342 = scalar_lea.sflag [#allocation6], %s341
        %s343 = sand.u32 %s118, 1
        %s344 = smul.addr %s343, 16
        %s345 = scalar_lea.vmem [#allocation7], %s344
        // Predicated region
        $region45: #{spn_block_forward.1} parent=35 // pred_check
          %p346 = pneg %p131
        $region46: #{spn_block_forward.1} parent=35 // pred_check_branch
          %348 = sbr.rel (%p346) target = $region48
        $region47: #{spn_block_forward.1} parent=35 // pred_region
          %350 = dma.done %s342, 256
        $region48: #{spn_block_forward.1} parent=35 // pred_fallthru
          _
        %s351 = sand.u32 %s148, 1
        %s352 = scalar_lea.sflag [#allocation9], %s351
        %s353 = sand.u32 %s148, 1
        %s354 = smul.addr %s353, 16
        %s355 = scalar_lea.vmem [#allocation8], %s354
        // Predicated region
        $region49: #{spn_block_forward.1} parent=35 // pred_check
          %p356 = pneg %p161
        $region50: #{spn_block_forward.1} parent=35 // pred_check_branch
          %358 = sbr.rel (%p356) target = $region52
        $region51: #{spn_block_forward.1} parent=35 // pred_region
          %360 = dma.done %s352, 256
        $region52: #{spn_block_forward.1} parent=35 // pred_fallthru
          _
        %s361 = sand.u32 %s58, 1
        %s362 = scalar_lea.sflag [#allocation3], %s361
        %s363 = sand.u32 %s58, 1
        %s364 = smul.addr %s363, 16
        %s365 = scalar_lea.vmem [#allocation2], %s364
        %p366 = pneg %p71
        %p367 = pneg %p68
        %s368 = sand.u32 %s27, 1
        %s369 = scalar_lea.sflag [#allocation6], %s368
        %s370 = sand.u32 %s88, 1
        %s371 = smul.addr %s370, 16
        %s372 = scalar_lea.vmem [#allocation5], %s371
        %p373 = pneg %p101
        %p374 = pneg %p98
        %s375 = sand.u32 %s27, 1
        %s376 = scalar_lea.sflag [#allocation6], %s375
        %s377 = sand.u32 %s118, 1
        %s378 = smul.addr %s377, 16
        %s379 = scalar_lea.vmem [#allocation7], %s378
        %p380 = pneg %p131
        %p381 = pneg %p128
        %s382 = sand.u32 %s148, 1
        %s383 = scalar_lea.sflag [#allocation9], %s382
        %s384 = sand.u32 %s148, 1
        %s385 = smul.addr %s384, 16
        %s386 = scalar_lea.vmem [#allocation8], %s385
        %p387 = pneg %p161
        %p388 = pneg %p158
        %p389 = pneg %p191
        %p390 = pneg %p188
        %s391 = sand.u32 %s178, 1
        %s392 = scalar_lea.sflag [#allocation4], %s391
        %s393 = sand.u32 %s178, 1
        %s394 = smul.addr %s393, 16
        %s395 = scalar_lea.vmem [#allocation10], %s394
        %s396 = smul.u32 2, %s34
        %s397 = smul.u32 2, %s34
        %s398 = smul.u32 2, %s34
        %s399 = smul.u32 2, %s34
        %s400 = smul.u32 2, %s34
        %v401 = vld [vmem:[%s325] sm:$0xff]
        %v402 = vld [vmem:[%s325 + $0x8] sm:$0xff]
        %v403 = vld [vmem:[%s335] sm:$0xff]
        %v404 = vld [vmem:[%s335 + $0x8] sm:$0xff]
        %v405 = vld [vmem:[%s345] sm:$0xff]
        %v406 = vld [vmem:[%s345 + $0x8] sm:$0xff]
        %v407 = vld [vmem:[%s355] sm:$0xff]
        %v408 = vld [vmem:[%s355 + $0x8] sm:$0xff]
        %v409 = vand.u32 2147483647, %v403
        %v410 = vand.u32 2147483647, %v404
        %v411 = vand.u32 2147483647, %v405
        %v412 = vand.u32 2147483647, %v406
        %v413 = vadd.f32 %v409, %v411
        %v414 = vadd.f32 %v410, %v412
        %v415 = vand.u32 2147483647, %v407
        %v416 = vand.u32 2147483647, %v408
        %v417 = vadd.f32 %v413, %v415
        %v418 = vadd.f32 %v414, %v416
        %vm419 = vcmp.eq.f32.partialorder %v417, 0.0
        %vm420 = vcmp.eq.f32.partialorder %v418, 0.0
        %v421 = vsel %vm419, 1e-06, %v417
        %v422 = vsel %vm420, 1e-06, %v418
        %v423 = vrcp.pop %v421
        %v424 = vmul.f32 %v421, %v423
        %v425 = vsub.f32 1.0, %v424
        %v426 = vmul.f32 %v423, %v425
        %v427 = vadd.f32 %v423, %v426
        %vm428 = vweird.f32 %v421
        %vm429 = vweird.f32 %v423
        %vm430 = vmor %vm428, %vm429
        %v431 = vsel %vm430, %v423, %v427
        %v432 = vand.u32 2147483647, %v421
        %vm433 = vcmp.eq.f32.partialorder %v432, 8.507059e+37
        %v434 = vand.u32 %v421, 2147483648
        %v435 = vor.u32 1.1754944e-38, %v434
        %v436 = vsel %vm433, %v435, %v431
        %v437 = vrcp.pop %v422
        %v438 = vmul.f32 %v422, %v437
        %v439 = vsub.f32 1.0, %v438
        %v440 = vmul.f32 %v437, %v439
        %v441 = vadd.f32 %v437, %v440
        %vm442 = vweird.f32 %v422
        %vm443 = vweird.f32 %v437
        %vm444 = vmor %vm442, %vm443
        %v445 = vsel %vm444, %v437, %v441
        %v446 = vand.u32 2147483647, %v422
        %vm447 = vcmp.eq.f32.partialorder %v446, 8.507059e+37
        %v448 = vand.u32 %v422, 2147483648
        %v449 = vor.u32 1.1754944e-38, %v448
        %v450 = vsel %vm447, %v449, %v445
        %vm451 = vcmp.ge.f32.partialorder %v421, 1.0
        %vm452 = vcmp.ge.f32.partialorder %v422, 1.0
        %v453 = vmul.f32 %v403, %v436
        %v454 = vmul.f32 %v404, %v450
        %v455 = vsel %vm451, %v453, %v403
        %v456 = vsel %vm452, %v454, %v404
        %v457 = vmul.f32 %v405, %v436
        %v458 = vmul.f32 %v406, %v450
        %v459 = vsel %vm451, %v457, %v405
        %v460 = vsel %vm452, %v458, %v406
        %v461 = vmul.f32 %v455, %v401
        %v462 = vmul.f32 %v456, %v402
        %v463 = vlaneseq
        %v464 = vand.u32 %v463, 127
        %vm465 = vcmp.eq.s32.totalorder %v464, 0
        %vm466 = vcmask 1047680
        %467 = vrot.lane.b32.xlu0 %v461, 16
        %v468 = vpop.permute.xlu0 %467
        %v469 = vsel %vm466, %v468, %v461
        %470 = vrot.lane.b32.xlu0 %v462, 16
        %v471 = vpop.permute.xlu0 %470
        %v472 = vsel %vm466, %v471, %v462
        %473 = vrot.lane.b32.xlu0 %v469, 16
        %v474 = vpop.permute.xlu0 %473
        %475 = vrot.lane.b32.xlu0 %v472, 16
        %v476 = vpop.permute.xlu0 %475
        %v477 = vsel %vm466, %v474, %v461
        %v478 = vsel %vm466, %v476, %v462
        %481 = vrot.lane.b32.xlu0 %v477, 113
        %v482 = vpop.permute.xlu0 %481
        %483 = vrot.lane.b32.xlu0 %v478, 113
        %v484 = vpop.permute.xlu0 %483
        %v487 = vsel %vm465, %v461, %v482
        %v488 = vsel %vm465, %v462, %v484
        %v489 = vmul.f32 %v459, %v487
        %v490 = vmul.f32 %v460, %v488
        %v491 = vadd.f32 %v461, %v489
        %v492 = vadd.f32 %v462, %v490
        %493 = vrot.lane.b32.xlu0 %v491, 16
        %v494 = vpop.permute.xlu0 %493
        %v495 = vsel %vm466, %v494, %v491
        %496 = vrot.lane.b32.xlu0 %v492, 16
        %v497 = vpop.permute.xlu0 %496
        %v498 = vsel %vm466, %v497, %v492
        %499 = vrot.lane.b32.xlu0 %v495, 16
        %v500 = vpop.permute.xlu0 %499
        %501 = vrot.lane.b32.xlu0 %v498, 16
        %v502 = vpop.permute.xlu0 %501
        %v503 = vsel %vm466, %v500, %v491
        %v504 = vsel %vm466, %v502, %v492
        %507 = vrot.lane.b32.xlu0 %v503, 113
        %v508 = vpop.permute.xlu0 %507
        %509 = vrot.lane.b32.xlu0 %v504, 113
        %v510 = vpop.permute.xlu0 %509
        %v513 = vsel %vm465, %v491, %v508
        %v514 = vsel %vm465, %v492, %v510
        %v515 = vmul.f32 %v459, %v513
        %v516 = vmul.f32 %v460, %v514
        %v517 = vadd.f32 %v461, %v515
        %v518 = vadd.f32 %v462, %v516
        %519 = vrot.lane.b32.xlu0 %v517, 16
        %v520 = vpop.permute.xlu0 %519
        %v521 = vsel %vm466, %v520, %v517
        %522 = vrot.lane.b32.xlu0 %v518, 16
        %v523 = vpop.permute.xlu0 %522
        %v524 = vsel %vm466, %v523, %v518
        %525 = vrot.lane.b32.xlu0 %v521, 16
        %v526 = vpop.permute.xlu0 %525
        %527 = vrot.lane.b32.xlu0 %v524, 16
        %v528 = vpop.permute.xlu0 %527
        %v529 = vsel %vm466, %v526, %v517
        %v530 = vsel %vm466, %v528, %v518
        %533 = vrot.lane.b32.xlu0 %v529, 113
        %v534 = vpop.permute.xlu0 %533
        %535 = vrot.lane.b32.xlu0 %v530, 113
        %v536 = vpop.permute.xlu0 %535
        %v539 = vsel %vm465, %v517, %v534
        %v540 = vsel %vm465, %v518, %v536
        %v541 = vmul.f32 %v459, %v539
        %v542 = vmul.f32 %v460, %v540
        %v543 = vadd.f32 %v461, %v541
        %v544 = vadd.f32 %v462, %v542
        %545 = vrot.lane.b32.xlu0 %v543, 16
        %v546 = vpop.permute.xlu0 %545
        %v547 = vsel %vm466, %v546, %v543
        %548 = vrot.lane.b32.xlu0 %v544, 16
        %v549 = vpop.permute.xlu0 %548
        %v550 = vsel %vm466, %v549, %v544
        %551 = vrot.lane.b32.xlu0 %v547, 16
        %v552 = vpop.permute.xlu0 %551
        %553 = vrot.lane.b32.xlu0 %v550, 16
        %v554 = vpop.permute.xlu0 %553
        %v555 = vsel %vm466, %v552, %v543
        %v556 = vsel %vm466, %v554, %v544
        %559 = vrot.lane.b32.xlu0 %v555, 113
        %v560 = vpop.permute.xlu0 %559
        %561 = vrot.lane.b32.xlu0 %v556, 113
        %v562 = vpop.permute.xlu0 %561
        %v565 = vsel %vm465, %v543, %v560
        %v566 = vsel %vm465, %v544, %v562
        %v567 = vmul.f32 %v459, %v565
        %v568 = vmul.f32 %v460, %v566
        %v569 = vadd.f32 %v461, %v567
        %v570 = vadd.f32 %v462, %v568
        %571 = vrot.lane.b32.xlu0 %v569, 16
        %v572 = vpop.permute.xlu0 %571
        %v573 = vsel %vm466, %v572, %v569
        %574 = vrot.lane.b32.xlu0 %v570, 16
        %v575 = vpop.permute.xlu0 %574
        %v576 = vsel %vm466, %v575, %v570
        %577 = vrot.lane.b32.xlu0 %v573, 16
        %v578 = vpop.permute.xlu0 %577
        %579 = vrot.lane.b32.xlu0 %v576, 16
        %v580 = vpop.permute.xlu0 %579
        %v581 = vsel %vm466, %v578, %v569
        %v582 = vsel %vm466, %v580, %v570
        %585 = vrot.lane.b32.xlu0 %v581, 113
        %v586 = vpop.permute.xlu0 %585
        %587 = vrot.lane.b32.xlu0 %v582, 113
        %v588 = vpop.permute.xlu0 %587
        %v591 = vsel %vm465, %v569, %v586
        %v592 = vsel %vm465, %v570, %v588
        %v593 = vmul.f32 %v459, %v591
        %v594 = vmul.f32 %v460, %v592
        %v595 = vadd.f32 %v461, %v593
        %v596 = vadd.f32 %v462, %v594
        %597 = vrot.lane.b32.xlu0 %v595, 16
        %v598 = vpop.permute.xlu0 %597
        %v599 = vsel %vm466, %v598, %v595
        %600 = vrot.lane.b32.xlu0 %v596, 16
        %v601 = vpop.permute.xlu0 %600
        %v602 = vsel %vm466, %v601, %v596
        %603 = vrot.lane.b32.xlu0 %v599, 16
        %v604 = vpop.permute.xlu0 %603
        %605 = vrot.lane.b32.xlu0 %v602, 16
        %v606 = vpop.permute.xlu0 %605
        %v607 = vsel %vm466, %v604, %v595
        %v608 = vsel %vm466, %v606, %v596
        %611 = vrot.lane.b32.xlu0 %v607, 113
        %v612 = vpop.permute.xlu0 %611
        %613 = vrot.lane.b32.xlu0 %v608, 113
        %v614 = vpop.permute.xlu0 %613
        %v617 = vsel %vm465, %v595, %v612
        %v618 = vsel %vm465, %v596, %v614
        %v619 = vmul.f32 %v459, %v617
        %v620 = vmul.f32 %v460, %v618
        %v621 = vadd.f32 %v461, %v619
        %v622 = vadd.f32 %v462, %v620
        %623 = vrot.lane.b32.xlu0 %v621, 16
        %v624 = vpop.permute.xlu0 %623
        %v625 = vsel %vm466, %v624, %v621
        %626 = vrot.lane.b32.xlu0 %v622, 16
        %v627 = vpop.permute.xlu0 %626
        %v628 = vsel %vm466, %v627, %v622
        %629 = vrot.lane.b32.xlu0 %v625, 16
        %v630 = vpop.permute.xlu0 %629
        %631 = vrot.lane.b32.xlu0 %v628, 16
        %v632 = vpop.permute.xlu0 %631
        %v633 = vsel %vm466, %v630, %v621
        %v634 = vsel %vm466, %v632, %v622
        %637 = vrot.lane.b32.xlu0 %v633, 113
        %v638 = vpop.permute.xlu0 %637
        %639 = vrot.lane.b32.xlu0 %v634, 113
        %v640 = vpop.permute.xlu0 %639
        %v643 = vsel %vm465, %v621, %v638
        %v644 = vsel %vm465, %v622, %v640
        %v645 = vmul.f32 %v459, %v643
        %v646 = vmul.f32 %v460, %v644
        %v647 = vadd.f32 %v461, %v645
        %v648 = vadd.f32 %v462, %v646
        %649 = vrot.lane.b32.xlu0 %v647, 16
        %v650 = vpop.permute.xlu0 %649
        %v651 = vsel %vm466, %v650, %v647
        %652 = vrot.lane.b32.xlu0 %v648, 16
        %v653 = vpop.permute.xlu0 %652
        %v654 = vsel %vm466, %v653, %v648
        %655 = vrot.lane.b32.xlu0 %v651, 16
        %v656 = vpop.permute.xlu0 %655
        %657 = vrot.lane.b32.xlu0 %v654, 16
        %v658 = vpop.permute.xlu0 %657
        %v659 = vsel %vm466, %v656, %v647
        %v660 = vsel %vm466, %v658, %v648
        %663 = vrot.lane.b32.xlu0 %v659, 113
        %v664 = vpop.permute.xlu0 %663
        %665 = vrot.lane.b32.xlu0 %v660, 113
        %v666 = vpop.permute.xlu0 %665
        %v669 = vsel %vm465, %v647, %v664
        %v670 = vsel %vm465, %v648, %v666
        %v671 = vmul.f32 %v459, %v669
        %v672 = vmul.f32 %v460, %v670
        %v673 = vadd.f32 %v461, %v671
        %v674 = vadd.f32 %v462, %v672
        %vm675 = vcmask 130048
        %676 = vst.msk [vmem:[%s395] sm:$0xff] %vm675, %v673
        %677 = vst.msk [vmem:[%s395 + $0x8] sm:$0xff] %vm675, %v674
        %s678 = sand.u32 %s178, 1
        %s679 = scalar_lea.sflag [#allocation4], %s678
        %s680 = sand.u32 %s178, 1
        %s681 = smul.addr %s680, 16
        %s682 = scalar_lea.vmem [#allocation10], %s681
        // Predicated region
        $region53: #{spn_block_forward.1} parent=35 // pred_check
          %p683 = pneg %p188
        $region54: #{spn_block_forward.1} parent=35 // pred_check_branch
          %685 = sbr.rel (%p683) target = $region56
        $region55: #{spn_block_forward.1} parent=35 // pred_region
          %s686 = smul.u32 2, %s34
          %688 = vsyncadd %s679, 0
          %s689 = smul.addr %s33, 2
          %s690 = sadd.s32 %s686, %s689
          %s691 = smul.addr %s32, 8
          %s692 = sadd.s32 %s690, %s691
          %s693 = smul.addr %s692, 8
          %s694 = scalar_lea.hbm %s4, %s693
          %s695 = sshll.u32 %s682, 4
          %s696 = int_to_ptr.vmem [resolvable:$true] %s695
          %s697 = sshll.u32 %s694, 4
          %s698 = int_to_ptr.hbm [resolvable:$true] %s697
          %703 = dma.vmem_to_hbm [thread:$0]  %s696, 256, %s698, %s679, 128, 128, 8
        $region56: #{spn_block_forward.1} parent=35 // pred_fallthru
          _
      $region36: #{spn_block_forward.1} parent=5 // pred_fallthru
        _
      %p704 = scmp.le.s32.totalorder 2, %s22
      // Predicated region
      $region57: #{spn_block_forward.1} parent=5 // pred_check
        %p705 = pneg %p704
      $region58: #{spn_block_forward.1} parent=5 // pred_check_branch
        %707 = sbr.rel (%p705) target = $region60
      $region59: #{spn_block_forward.1} parent=5 // pred_region
        %s708 = ssub.s32 %s22, 2
        // Predicated region
        $region61: #{spn_block_forward.1} parent=59 // pred_check
          %p709 = pneg %p194
        $region62: #{spn_block_forward.1} parent=59 // pred_check_branch
          %711 = sbr.rel (%p709) target = $region64
        $region63: #{spn_block_forward.1} parent=59 // pred_region
          %s712 = sand.u32 %s179, 1
          %s713 = scalar_lea.sflag [#allocation4], %s712
          %s714 = sand.u32 %s179, 1
          %s715 = smul.addr %s714, 16
          %s716 = scalar_lea.vmem [#allocation10], %s715
          %718 = dma.done %s713, 256
        $region64: #{spn_block_forward.1} parent=59 // pred_fallthru
          _
      $region60: #{spn_block_forward.1} parent=5 // pred_fallthru
        _
    $region6: #{spn_block_forward.1} parent=1 // loop_footer
      %s26 = sadd.s32 1, %s22
    $region7: #{spn_block_forward.1} parent=1 // loop_footer_branch
      %21 = sbr.rel target = $region3
    $region8: #{spn_block_forward.1} parent=1 // loop_exit
      _
    %719 = vsyncpa [#allocation3], 1
    %s720 = scalar_lea.sflag [#allocation3], 1
    %721 = vsyncpa %s720, 1
    %722 = vsyncpa [#allocation6], 1
    %s723 = scalar_lea.sflag [#allocation6], 1
    %724 = vsyncpa %s723, 1
    %725 = vsyncpa [#allocation9], 1
    %s726 = scalar_lea.sflag [#allocation9], 1
    %727 = vsyncpa %s726, 1
    %728 = vsyncpa [#allocation4], 1
    %s729 = scalar_lea.sflag [#allocation4], 1
    %730 = vsyncpa %s729, 1

</llo_original>
